<compile_context>
chip_gen: v6e
topology: v6e:2x2x1
jax: 0.10.0
libtpu: 0.0.40
codegen_flags: <defaults>
</compile_context>

<pallas_src>
import jax
import jax.numpy as jnp
from jax.experimental import pallas as pl
from jax.experimental.pallas import tpu as pltpu

EPS = 1e-5


def add_layernorm_kernel(x_ref, y_ref, g_ref, b_ref, o_ref):
    # x_ref, y_ref, o_ref: (block_rows, C); g_ref, b_ref: (1, C)
    s = x_ref[...] + y_ref[...]                      # fused residual add (VPU)
    inv_c = 1.0 / s.shape[-1]                        # constant multiply, no divide
    mean = jnp.sum(s, axis=-1, keepdims=True) * inv_c        # XLU reduction
    centered = s - mean
    var = jnp.sum(centered * centered, axis=-1, keepdims=True) * inv_c
    inv = jax.lax.rsqrt(var + EPS)                   # EUP
    o_ref[...] = centered * inv * g_ref[...] + b_ref[...]


def add_layernorm(x, y, gamma, beta, *, block_rows=None):
    """x, y: (B, H, W, C) float32; gamma, beta: (C,). Returns (B, H, W, C)."""
    B, H, W, C = x.shape
    rows = B * H * W
    x2 = x.reshape(rows, C)
    y2 = y.reshape(rows, C)
    g2 = gamma.reshape(1, C)
    b2 = beta.reshape(1, C)

    if block_rows is None:
        if rows <= 8:
            # Single full-extent block: exempt from the 8-sublane rule.
            block_rows = rows
        else:
            # Target >=2 blocks so v7x's two TensorCores both get work; cap the
            # tile at 1024 rows (near-roofline per measured tile sweeps) for
            # large row counts.  Tile stays a sublane multiple; the ragged last
            # block is handled by Pallas (masked writes).
            block_rows = min(1024, ((pl.cdiv(rows, 2) + 7) // 8) * 8)
    n_blocks = pl.cdiv(rows, block_rows)

    itemsize = jnp.dtype(x.dtype).itemsize
    cost = pl.CostEstimate(
        flops=9 * rows * C,
        transcendentals=rows,
        bytes_accessed=3 * rows * C * itemsize + 2 * C * itemsize,
    )

    out = pl.pallas_call(
        add_layernorm_kernel,
        out_shape=jax.ShapeDtypeStruct((rows, C), x.dtype),
        grid=(n_blocks,),
        in_specs=[
            pl.BlockSpec((block_rows, C), lambda i: (i, 0)),
            pl.BlockSpec((block_rows, C), lambda i: (i, 0)),
            pl.BlockSpec((1, C), lambda i: (0, 0)),   # gamma: VMEM-resident
            pl.BlockSpec((1, C), lambda i: (0, 0)),   # beta:  VMEM-resident
        ],
        out_specs=pl.BlockSpec((block_rows, C), lambda i: (i, 0)),
        compiler_params=pltpu.CompilerParams(
            dimension_semantics=("parallel",),        # shard row blocks across TCs (v7x)
        ),
        cost_estimate=cost,
    )(x2, y2, g2, b2)

    return out.reshape(B, H, W, C)

# TODO(synk): the remaining order-of-magnitude lever is fusing this add+LN into
# the epilogue of the kernel producing x149/x156 (keep `s` resident, skip the
# extra HBM round trip); as a standalone pallas_call the launch dominates at
# 196 rows.


if __name__ == "__main__":
    key = jax.random.PRNGKey(0)
    k1, k2, k3, k4 = jax.random.split(key, 4)

    # Shapes implied by the module: (1, 14, 14, 512), LayerNorm over C=512.
    B, H, W, C = 1, 14, 14, 512
    x149 = jax.random.normal(k1, (B, H, W, C), dtype=jnp.float32)
    x156 = jax.random.normal(k2, (B, H, W, C), dtype=jnp.float32)

    # Random affine params to exercise the elementwise_affine path.
    gamma = 1.0 + 0.1 * jax.random.normal(k3, (C,), dtype=jnp.float32)
    beta = 0.1 * jax.random.normal(k4, (C,), dtype=jnp.float32)

    out = add_layernorm(x149, x156, gamma, beta)
    out = jax.block_until_ready(out)

    # Reference check in plain JAX (two-pass, matches PyTorch LayerNorm).
    s = x149 + x156
    mean = jnp.mean(s, axis=-1, keepdims=True)
    var = jnp.mean((s - mean) ** 2, axis=-1, keepdims=True)
    ref = (s - mean) * jax.lax.rsqrt(var + EPS) * gamma + beta
    assert out.shape == (B, H, W, C)
    assert jnp.allclose(out, ref, atol=1e-4, rtol=1e-5), "mismatch vs reference"

    print("KERNEL_OK")
</pallas_src>

<mosaic_0001>
module attributes {stable_mosaic.version = 11 : i64} {
  func.func @add_layernorm_kernel(%arg0: i32, %arg1: memref<104x512xf32, #tpu.memory_space<vmem>>, %arg2: memref<104x512xf32, #tpu.memory_space<vmem>>, %arg3: memref<1x512xf32, #tpu.memory_space<vmem>>, %arg4: memref<1x512xf32, #tpu.memory_space<vmem>>, %arg5: memref<104x512xf32, #tpu.memory_space<vmem>>) attributes {dimension_semantics = [#tpu.dimension_semantics<parallel>], iteration_bounds = array<i64: 2>, scalar_prefetch = 0 : i64, scratch_operands = 0 : i64, tpu.core_type = #tpu.core_type<tc>, window_params = [{transform_indices = @transform_0, window_bounds = array<i64: 104, 512>}, {transform_indices = @transform_1, window_bounds = array<i64: 104, 512>}, {pipeline_mode = #tpu.pipeline_mode<synchronous>, transform_indices = @transform_2, window_bounds = array<i64: 1, 512>}, {pipeline_mode = #tpu.pipeline_mode<synchronous>, transform_indices = @transform_3, window_bounds = array<i64: 1, 512>}, {transform_indices = @transform_4, window_bounds = array<i64: 104, 512>}]} {
    %c0 = arith.constant 0 : index
    %c0_0 = arith.constant 0 : index
    %0 = vector.load %arg1[%c0, %c0_0] : memref<104x512xf32, #tpu.memory_space<vmem>>, vector<104x512xf32>
    %c0_1 = arith.constant 0 : index
    %c0_2 = arith.constant 0 : index
    %1 = vector.load %arg2[%c0_1, %c0_2] : memref<104x512xf32, #tpu.memory_space<vmem>>, vector<104x512xf32>
    %2 = arith.addf %0, %1 : vector<104x512xf32>
    %cst = arith.constant dense<0.000000e+00> : vector<104xf32>
    %3 = vector.multi_reduction <add>, %2, %cst [1] : vector<104x512xf32> to vector<104xf32>
    %4 = vector.shape_cast %3 : vector<104xf32> to vector<104x1xf32>
    %cst_3 = arith.constant 0.001953125 : f32
    %5 = vector.broadcast %cst_3 : f32 to vector<104x1xf32>
    %6 = arith.mulf %4, %5 : vector<104x1xf32>
    %7 = vector.broadcast %6 : vector<104x1xf32> to vector<104x512xf32>
    %8 = arith.subf %2, %7 : vector<104x512xf32>
    %9 = arith.mulf %8, %8 : vector<104x512xf32>
    %cst_4 = arith.constant dense<0.000000e+00> : vector<104xf32>
    %10 = vector.multi_reduction <add>, %9, %cst_4 [1] : vector<104x512xf32> to vector<104xf32>
    %11 = vector.shape_cast %10 : vector<104xf32> to vector<104x1xf32>
    %cst_5 = arith.constant 0.001953125 : f32
    %12 = vector.broadcast %cst_5 : f32 to vector<104x1xf32>
    %13 = arith.mulf %11, %12 : vector<104x1xf32>
    %cst_6 = arith.constant 9.99999974E-6 : f32
    %14 = vector.broadcast %cst_6 : f32 to vector<104x1xf32>
    %15 = arith.addf %13, %14 : vector<104x1xf32>
    %16 = math.rsqrt %15 : vector<104x1xf32>
    %17 = vector.broadcast %16 : vector<104x1xf32> to vector<104x512xf32>
    %18 = arith.mulf %8, %17 : vector<104x512xf32>
    %c0_7 = arith.constant 0 : index
    %c0_8 = arith.constant 0 : index
    %19 = vector.load %arg3[%c0_7, %c0_8] : memref<1x512xf32, #tpu.memory_space<vmem>>, vector<1x512xf32>
    %20 = vector.broadcast %19 : vector<1x512xf32> to vector<104x512xf32>
    %21 = arith.mulf %18, %20 : vector<104x512xf32>
    %c0_9 = arith.constant 0 : index
    %c0_10 = arith.constant 0 : index
    %22 = vector.load %arg4[%c0_9, %c0_10] : memref<1x512xf32, #tpu.memory_space<vmem>>, vector<1x512xf32>
    %23 = vector.broadcast %22 : vector<1x512xf32> to vector<104x512xf32>
    %24 = arith.addf %21, %23 : vector<104x512xf32>
    %c0_11 = arith.constant 0 : index
    %c0_12 = arith.constant 0 : index
    %25 = vector.load %arg5[%c0_11, %c0_12] : memref<104x512xf32, #tpu.memory_space<vmem>>, vector<104x512xf32>
    tpu.vector_store %arg5[%c0_11, %c0_12], %24 {strides = array<i32>} : memref<104x512xf32, #tpu.memory_space<vmem>>, vector<104x512xf32>,
    return
  }
  func.func @transform_0(%arg0: i32) -> (i32, i32) {
    %c0_i32 = arith.constant 0 : i32
    %c0_i32_0 = arith.constant 0 : i32
    return %arg0, %c0_i32 : i32, i32
  }
  func.func @transform_1(%arg0: i32) -> (i32, i32) {
    %c0_i32 = arith.constant 0 : i32
    %c0_i32_0 = arith.constant 0 : i32
    return %arg0, %c0_i32 : i32, i32
  }
  func.func @transform_2(%arg0: i32) -> (i32, i32) {
    %c0_i32 = arith.constant 0 : i32
    %c0_i32_0 = arith.constant 0 : i32
    %c0_i32_1 = arith.constant 0 : i32
    return %c0_i32, %c0_i32_0 : i32, i32
  }
  func.func @transform_3(%arg0: i32) -> (i32, i32) {
    %c0_i32 = arith.constant 0 : i32
    %c0_i32_0 = arith.constant 0 : i32
    %c0_i32_1 = arith.constant 0 : i32
    return %c0_i32, %c0_i32_0 : i32, i32
  }
  func.func @transform_4(%arg0: i32) -> (i32, i32) {
    %c0_i32 = arith.constant 0 : i32
    %c0_i32_0 = arith.constant 0 : i32
    return %arg0, %c0_i32 : i32, i32
  }
}

</mosaic_0001>

<llo_original>
// kernel: tpu_custom_call.1
$region0: #{tpu_custom_call.1}
  #allocation0 [shape = 'u32[]', space=smem, size = 0x4, offset = 0x4, fixed_abs, tag = 'smem constant byte address 0x4 - core index']
  #allocation1 [shape = 'u32[144,128]{1,0:T(1,128)}', space=vmem, size = 0x12000, scoped, tag = 'internal scratch']
  %s0 = inlined_call_operand.hbm [shape: f32[196,512], index: 0, kind: input, shape index: {}]
  %s1 = inlined_call_operand.hbm [shape: f32[196,512], index: 1, kind: input, shape index: {}]
  %s2 = inlined_call_operand.hbm [shape: f32[1,512], index: 2, kind: input, shape index: {}]
  %s3 = inlined_call_operand.vmem [shape: f32[1,512], index: 3, kind: input, shape index: {}]
  %s4 = inlined_call_operand.hbm [shape: f32[196,512], index: 4, kind: output, shape index: {}]
  %s5 = sld [smem:[#allocation0]]
  $region61: #{tpu_custom_call.1} parent=0
    _
  %s7 = ssub.s32 1, %s5
  %s8 = scalar_select 0, %s7, %s5
  $region1: #{tpu_custom_call.1} parent=0
    #allocation2 [shape = 'u8[425984]{0}', space=vmem, size = 0x68000, scoped, tag = 'input window, operand 0']
    #allocation3 [shape = 's32[2]{0}', space=sflag, size = 0x8, scoped, tag = 'scoped memory for tpu_custom_call.1']
    #allocation4 [shape = 's32[2]{0}', space=sflag, size = 0x8, scoped, tag = 'scoped memory for tpu_custom_call.1']
    #allocation5 [shape = 'u8[425984]{0}', space=vmem, size = 0x68000, scoped, tag = 'input window, operand 1']
    #allocation6 [shape = 's32[2]{0}', space=sflag, size = 0x8, scoped, tag = 'scoped memory for tpu_custom_call.1']
    #allocation7 [shape = 'u8[2048]{0}', space=vmem, size = 0x800, scoped, tag = 'input window, operand 2, single buffered']
    #allocation8 [shape = 'u8[425984]{0}', space=vmem, size = 0x68000, scoped, tag = 'output window, operand 0']
    %9 = vsyncpa [#allocation3], 0
    %s10 = scalar_lea.sflag [#allocation3], 1
    %11 = vsyncpa %s10, 0
    %12 = vsyncpa [#allocation6], 0
    %s13 = scalar_lea.sflag [#allocation6], 1
    %14 = vsyncpa %s13, 0
    %15 = vsyncpa [#allocation4], 0
    %s16 = scalar_lea.sflag [#allocation4], 1
    %17 = vsyncpa %s16, 0
    loop: start=0, step=1, limit=4
    $region2: #{tpu_custom_call.1} parent=1 // loop_pre_header
      _
    $region3: #{tpu_custom_call.1} parent=1 // loop_header
      %s19 = sphi 0, %s23
      %p20 = scmp.ge.s32.totalorder %s19, 4
      %s29 = sphi 0, %s31
      %s32 = sphi 0, %s29
      %s33 = sphi 0, %s32
      %s49 = sphi 0, %s33
      %s55 = sphi 0, %s57
      %s58 = sphi 0, %s55
      %s59 = sphi 0, %s58
      %s75 = sphi 0, %s59
      %s79 = sphi 0, %s79
      %s81 = sphi 0, %s79
      %s82 = sphi 0, %s81
      %s96 = sphi 0, %s82
      %s100 = sphi 0, %s100
      %s102 = sphi 0, %s100
      %s103 = sphi 0, %s102
      %s117 = sphi 0, %s103
      %s123 = sphi 0, %s125
      %s126 = sphi 0, %s123
      %s127 = sphi 0, %s126
      %s143 = sphi 0, %s127
    $region4: #{tpu_custom_call.1} parent=1 // loop_header_branch
      %22 = sbr.rel (%p20) target = $region8
    $region5: #{tpu_custom_call.1} parent=1 // loop_body
      %s24 = ssub.s32 %s19, 1
      %s25 = ssub.s32 %s19, 2
      %s26 = sadd.s32 %s19, 1
      %s27 = ssub.s32 %s19, %s26
      %p28 = scmp.eq.s32.totalorder %s27, 0
      %s30 = sadd.s32 %s29, 1
      %s31 = scalar_select %p28, %s29, %s30
      %p34 = pneg %p28
      %p35 = scmp.eq.s32.totalorder %s19, 1
      %p36 = por %p34, %p35
      %p37 = scmp.ne.s32.totalorder %s29, %s32
      %p38 = scmp.eq.s32.totalorder %s19, 0
      %p39 = por %p37, %p38
      %p40 = scmp.ne.s32.totalorder %s29, %s32
      %p41 = scmp.eq.s32.totalorder %s24, 1
      %p42 = por %p40, %p41
      %p43 = scmp.ne.s32.totalorder %s32, %s33
      %p44 = scmp.eq.s32.totalorder %s24, 0
      %p45 = por %p43, %p44
      %p46 = scmp.ne.s32.totalorder %s32, %s33
      %p47 = scmp.eq.s32.totalorder %s25, 1
      %p48 = por %p46, %p47
      %p50 = scmp.ne.s32.totalorder %s33, %s49
      %p51 = scmp.eq.s32.totalorder %s25, 0
      %p52 = por %p50, %p51
      %s53 = ssub.s32 %s19, %s26
      %p54 = scmp.eq.s32.totalorder %s53, 0
      %s56 = sadd.s32 %s55, 1
      %s57 = scalar_select %p54, %s55, %s56
      %p60 = pneg %p54
      %p61 = scmp.eq.s32.totalorder %s19, 1
      %p62 = por %p60, %p61
      %p63 = scmp.ne.s32.totalorder %s55, %s58
      %p64 = scmp.eq.s32.totalorder %s19, 0
      %p65 = por %p63, %p64
      %p66 = scmp.ne.s32.totalorder %s55, %s58
      %p67 = scmp.eq.s32.totalorder %s24, 1
      %p68 = por %p66, %p67
      %p69 = scmp.ne.s32.totalorder %s58, %s59
      %p70 = scmp.eq.s32.totalorder %s24, 0
      %p71 = por %p69, %p70
      %p72 = scmp.ne.s32.totalorder %s58, %s59
      %p73 = scmp.eq.s32.totalorder %s25, 1
      %p74 = por %p72, %p73
      %p76 = scmp.ne.s32.totalorder %s59, %s75
      %p77 = scmp.eq.s32.totalorder %s25, 0
      %p78 = por %p76, %p77
      %s80 = sadd.s32 %s79, 1
      %p83 = scmp.eq.s32.totalorder %s19, 1
      %p84 = scmp.ne.s32.totalorder %s79, %s81
      %p85 = scmp.eq.s32.totalorder %s19, 0
      %p86 = por %p84, %p85
      %p87 = scmp.ne.s32.totalorder %s79, %s81
      %p88 = scmp.eq.s32.totalorder %s24, 1
      %p89 = por %p87, %p88
      %p90 = scmp.ne.s32.totalorder %s81, %s82
      %p91 = scmp.eq.s32.totalorder %s24, 0
      %p92 = por %p90, %p91
      %p93 = scmp.ne.s32.totalorder %s81, %s82
      %p94 = scmp.eq.s32.totalorder %s25, 1
      %p95 = por %p93, %p94
      %p97 = scmp.ne.s32.totalorder %s82, %s96
      %p98 = scmp.eq.s32.totalorder %s25, 0
      %p99 = por %p97, %p98
      %s101 = sadd.s32 %s100, 1
      %p104 = scmp.eq.s32.totalorder %s19, 1
      %p105 = scmp.ne.s32.totalorder %s100, %s102
      %p106 = scmp.eq.s32.totalorder %s19, 0
      %p107 = por %p105, %p106
      %p108 = scmp.ne.s32.totalorder %s100, %s102
      %p109 = scmp.eq.s32.totalorder %s24, 1
      %p110 = por %p108, %p109
      %p111 = scmp.ne.s32.totalorder %s102, %s103
      %p112 = scmp.eq.s32.totalorder %s24, 0
      %p113 = por %p111, %p112
      %p114 = scmp.ne.s32.totalorder %s102, %s103
      %p115 = scmp.eq.s32.totalorder %s25, 1
      %p116 = por %p114, %p115
      %p118 = scmp.ne.s32.totalorder %s103, %s117
      %p119 = scmp.eq.s32.totalorder %s25, 0
      %p120 = por %p118, %p119
      %s121 = ssub.s32 %s19, %s26
      %p122 = scmp.eq.s32.totalorder %s121, 0
      %s124 = sadd.s32 %s123, 1
      %s125 = scalar_select %p122, %s123, %s124
      %p128 = pneg %p122
      %p129 = scmp.eq.s32.totalorder %s19, 1
      %p130 = por %p128, %p129
      %p131 = scmp.ne.s32.totalorder %s123, %s126
      %p132 = scmp.eq.s32.totalorder %s19, 0
      %p133 = por %p131, %p132
      %p134 = scmp.ne.s32.totalorder %s123, %s126
      %p135 = scmp.eq.s32.totalorder %s24, 1
      %p136 = por %p134, %p135
      %p137 = scmp.ne.s32.totalorder %s126, %s127
      %p138 = scmp.eq.s32.totalorder %s24, 0
      %p139 = por %p137, %p138
      %p140 = scmp.ne.s32.totalorder %s126, %s127
      %p141 = scmp.eq.s32.totalorder %s25, 1
      %p142 = por %p140, %p141
      %p144 = scmp.ne.s32.totalorder %s127, %s143
      %p145 = scmp.eq.s32.totalorder %s25, 0
      %p146 = por %p144, %p145
      %p147 = scmp.le.s32.totalorder 1, %s19
      %p148 = scmp.lt.s32.totalorder %s19, 3
      %p149 = pnand %p147, %p148
      %p150 = pneg %p149
      // Predicated region
      $region9: #{tpu_custom_call.1} parent=5 // pred_check
        _
      $region10: #{tpu_custom_call.1} parent=5 // pred_check_branch
        %152 = sbr.rel (%p149) target = $region12
      $region11: #{tpu_custom_call.1} parent=5 // pred_region
        %s153 = ssub.s32 %s19, 1
        // Predicated region
        $region13: #{tpu_custom_call.1} parent=11 // pred_check
          %p154 = pneg %p92
        $region14: #{tpu_custom_call.1} parent=11 // pred_check_branch
          %156 = sbr.rel (%p154) target = $region16
        $region15: #{tpu_custom_call.1} parent=11 // pred_region
          %s158 = ssub.s32 64, 64
          %159 = vsyncadd [#allocation6], %s158
          %s161 = sshll.u32 [#allocation7], 4
          %s162 = int_to_ptr.vmem [resolvable:$true] %s161
          %164 = dma.hbm_to_vmem [thread:$0]  %s2, 64, %s162, [#allocation6]
        $region16: #{tpu_custom_call.1} parent=11 // pred_fallthru
          _
        // Predicated region
        $region17: #{tpu_custom_call.1} parent=11 // pred_check
          %p165 = pneg %p113
        $region18: #{tpu_custom_call.1} parent=11 // pred_check_branch
          %167 = sbr.rel (%p165) target = $region20
        $region19: #{tpu_custom_call.1} parent=11 // pred_region
          _
        $region20: #{tpu_custom_call.1} parent=11 // pred_fallthru
          _
      $region12: #{tpu_custom_call.1} parent=5 // pred_fallthru
        _
      %p168 = scmp.lt.s32.totalorder %s19, 2
      // Predicated region
      $region21: #{tpu_custom_call.1} parent=5 // pred_check
        %p169 = pneg %p168
      $region22: #{tpu_custom_call.1} parent=5 // pred_check_branch
        %171 = sbr.rel (%p169) target = $region24
      $region23: #{tpu_custom_call.1} parent=5 // pred_region
        // Predicated region
        $region25: #{tpu_custom_call.1} parent=23 // pred_check
          %p172 = pneg %p39
        $region26: #{tpu_custom_call.1} parent=23 // pred_check_branch
          %174 = sbr.rel (%p172) target = $region28
        $region27: #{tpu_custom_call.1} parent=23 // pred_region
          %s175 = sand.u32 %s29, 1
          %s176 = scalar_lea.sflag [#allocation3], %s175
          %s177 = sand.u32 %s29, 1
          %s178 = smul.addr %s177, 416
          %s179 = scalar_lea.vmem [#allocation2], %s178
          %s180 = smul.u32 13, %s19
          %s181 = ssub.s32 25, %s180
          %p182 = scmp.lt.s32.totalorder %s181, 13
          %s183 = scalar_select %p182, %s181, 13
          %s184 = smul.u32 128, %s183
          %s185 = smul.u32 %s184, 4
          %s187 = ssub.s32 6656, %s185
          %188 = vsyncadd %s176, %s187
          %p189 = scmp.ne.s32.totalorder 0, %s185
          %s190 = smul.addr %s180, 4
          %s191 = smul.addr %s190, 128
          %s192 = scalar_lea.hbm %s0, %s191
          %s193 = smul.u32 32, %s183
          %s194 = sshll.u32 %s179, 4
          %s195 = int_to_ptr.vmem [resolvable:$true] %s194
          %s196 = sshll.u32 %s193, 4
          %200 = dma.hbm_to_vmem [thread:$0]  (%p189), %s192, %s196, %s195, %s176, 512, 512, 32
        $region28: #{tpu_custom_call.1} parent=23 // pred_fallthru
          _
        // Predicated region
        $region29: #{tpu_custom_call.1} parent=23 // pred_check
          %p201 = pneg %p65
        $region30: #{tpu_custom_call.1} parent=23 // pred_check_branch
          %203 = sbr.rel (%p201) target = $region32
        $region31: #{tpu_custom_call.1} parent=23 // pred_region
          %s204 = sand.u32 %s19, 1
          %s205 = scalar_lea.sflag [#allocation6], %s204
          %s206 = sand.u32 %s55, 1
          %s207 = smul.addr %s206, 416
          %s208 = scalar_lea.vmem [#allocation5], %s207
          %s209 = smul.u32 13, %s19
          %s210 = ssub.s32 25, %s209
          %p211 = scmp.lt.s32.totalorder %s210, 13
          %s212 = scalar_select %p211, %s210, 13
          %s213 = smul.u32 128, %s212
          %s214 = smul.u32 %s213, 4
          %s216 = ssub.s32 6656, %s214
          %217 = vsyncadd %s205, %s216
          %p218 = scmp.ne.s32.totalorder 0, %s214
          %s219 = smul.addr %s209, 4
          %s220 = smul.addr %s219, 128
          %s221 = scalar_lea.hbm %s1, %s220
          %s222 = smul.u32 32, %s212
          %s223 = sshll.u32 %s208, 4
          %s224 = int_to_ptr.vmem [resolvable:$true] %s223
          %s225 = sshll.u32 %s222, 4
          %229 = dma.hbm_to_vmem [thread:$0]  (%p218), %s221, %s225, %s224, %s205, 512, 512, 32
        $region32: #{tpu_custom_call.1} parent=23 // pred_fallthru
          _
      $region24: #{tpu_custom_call.1} parent=5 // pred_fallthru
        _
      %p230 = scmp.le.s32.totalorder 1, %s19
      %p231 = scmp.lt.s32.totalorder %s19, 3
      %p232 = pnand %p230, %p231
      %p233 = pneg %p232
      // Predicated region
      $region33: #{tpu_custom_call.1} parent=5 // pred_check
        _
      $region34: #{tpu_custom_call.1} parent=5 // pred_check_branch
        %235 = sbr.rel (%p232) target = $region36
      $region35: #{tpu_custom_call.1} parent=5 // pred_region
        %s236 = ssub.s32 %s19, 1
        %s237 = sand.u32 %s32, 1
        %s238 = scalar_lea.sflag [#allocation3], %s237
        %s239 = sand.u32 %s32, 1
        %s240 = smul.addr %s239, 416
        %s241 = scalar_lea.vmem [#allocation2], %s240
        // Predicated region
        $region37: #{tpu_custom_call.1} parent=35 // pred_check
          %p242 = pneg %p45
        $region38: #{tpu_custom_call.1} parent=35 // pred_check_branch
          %244 = sbr.rel (%p242) target = $region40
        $region39: #{tpu_custom_call.1} parent=35 // pred_region
          %245 = dma.done %s238, 6656
        $region40: #{tpu_custom_call.1} parent=35 // pred_fallthru
          _
        %s246 = sand.u32 %s24, 1
        %s247 = scalar_lea.sflag [#allocation6], %s246
        %s248 = sand.u32 %s58, 1
        %s249 = smul.addr %s248, 416
        %s250 = scalar_lea.vmem [#allocation5], %s249
        // Predicated region
        $region41: #{tpu_custom_call.1} parent=35 // pred_check
          %p251 = pneg %p71
        $region42: #{tpu_custom_call.1} parent=35 // pred_check_branch
          %253 = sbr.rel (%p251) target = $region44
        $region43: #{tpu_custom_call.1} parent=35 // pred_region
          %254 = dma.done %s247, 6656
        $region44: #{tpu_custom_call.1} parent=35 // pred_fallthru
          _
        // Predicated region
        $region45: #{tpu_custom_call.1} parent=35 // pred_check
          %p255 = pneg %p92
        $region46: #{tpu_custom_call.1} parent=35 // pred_check_branch
          %257 = sbr.rel (%p255) target = $region48
        $region47: #{tpu_custom_call.1} parent=35 // pred_region
          %258 = dma.done [#allocation6], 64
        $region48: #{tpu_custom_call.1} parent=35 // pred_fallthru
          _
        %s259 = sand.u32 %s32, 1
        %s260 = scalar_lea.sflag [#allocation3], %s259
        %s261 = sand.u32 %s32, 1
        %s262 = smul.addr %s261, 416
        %s263 = scalar_lea.vmem [#allocation2], %s262
        %p264 = pneg %p45
        %p265 = pneg %p42
        %s266 = sand.u32 %s24, 1
        %s267 = scalar_lea.sflag [#allocation6], %s266
        %s268 = sand.u32 %s58, 1
        %s269 = smul.addr %s268, 416
        %s270 = scalar_lea.vmem [#allocation5], %s269
        %p271 = pneg %p71
        %p272 = pneg %p68
        %p273 = pneg %p92
        %p274 = pneg %p89
        %p275 = pneg %p113
        %p276 = pneg %p110
        %p277 = pneg %p139
        %p278 = pneg %p136
        %s279 = sand.u32 %s126, 1
        %s280 = scalar_lea.sflag [#allocation4], %s279
        %s281 = sand.u32 %s126, 1
        %s282 = smul.addr %s281, 416
        %s283 = scalar_lea.vmem [#allocation8], %s282
        %s284 = smul.u32 13, %s24
        %s285 = ssub.s32 25, %s284
        %p286 = scmp.lt.s32.totalorder %s285, 13
        %s287 = scalar_select %p286, %s285, 13
        %s288 = smul.u32 128, %s287
        %s289 = smul.u32 %s288, 4
        %s290 = smul.u32 13, %s24
        %s291 = ssub.s32 25, %s290
        %p292 = scmp.lt.s32.totalorder %s291, 13
        %s293 = scalar_select %p292, %s291, 13
        %s294 = smul.u32 128, %s293
        %s295 = smul.u32 %s294, 4
        %s296 = smul.u32 13, %s24
        %s297 = ssub.s32 25, %s296
        %p298 = scmp.lt.s32.totalorder %s297, 13
        %s299 = scalar_select %p298, %s297, 13
        %s300 = smul.u32 128, %s299
        %s301 = smul.u32 %s300, 4
        %v302 = vld [vmem:[%s241] sm:$0xff]
        %v303 = vld [vmem:[%s241 + $0x8] sm:$0xff]
        %v304 = vld [vmem:[%s241 + $0x10] sm:$0xff]
        %v305 = vld [vmem:[%s241 + $0x18] sm:$0xff]
        %v306 = vld [vmem:[%s241 + $0x20] sm:$0xff]
        %v307 = vld [vmem:[%s241 + $0x28] sm:$0xff]
        %v308 = vld [vmem:[%s241 + $0x30] sm:$0xff]
        %v309 = vld [vmem:[%s241 + $0x38] sm:$0xff]
        %v310 = vld [vmem:[%s241 + $0x40] sm:$0xff]
        %v311 = vld [vmem:[%s241 + $0x48] sm:$0xff]
        %v312 = vld [vmem:[%s241 + $0x50] sm:$0xff]
        %v313 = vld [vmem:[%s241 + $0x58] sm:$0xff]
        %v314 = vld [vmem:[%s241 + $0x60] sm:$0xff]
        %v315 = vld [vmem:[%s241 + $0x68] sm:$0xff]
        %v316 = vld [vmem:[%s241 + $0x70] sm:$0xff]
        %v317 = vld [vmem:[%s241 + $0x78] sm:$0xff]
        %v318 = vld [vmem:[%s241 + $0x80] sm:$0xff]
        %v319 = vld [vmem:[%s241 + $0x88] sm:$0xff]
        %v320 = vld [vmem:[%s241 + $0x90] sm:$0xff]
        %v321 = vld [vmem:[%s241 + $0x98] sm:$0xff]
        %v322 = vld [vmem:[%s241 + $0xa0] sm:$0xff]
        %v323 = vld [vmem:[%s241 + $0xa8] sm:$0xff]
        %v324 = vld [vmem:[%s241 + $0xb0] sm:$0xff]
        %v325 = vld [vmem:[%s241 + $0xb8] sm:$0xff]
        %v326 = vld [vmem:[%s241 + $0xc0] sm:$0xff]
        %v327 = vld [vmem:[%s241 + $0xc8] sm:$0xff]
        %v328 = vld [vmem:[%s241 + $0xd0] sm:$0xff]
        %v329 = vld [vmem:[%s241 + $0xd8] sm:$0xff]
        %v330 = vld [vmem:[%s241 + $0xe0] sm:$0xff]
        %v331 = vld [vmem:[%s241 + $0xe8] sm:$0xff]
        %v332 = vld [vmem:[%s241 + $0xf0] sm:$0xff]
        %v333 = vld [vmem:[%s241 + $0xf8] sm:$0xff]
        %v334 = vld [vmem:[%s241 + $0x100] sm:$0xff]
        %v335 = vld [vmem:[%s241 + $0x108] sm:$0xff]
        %v336 = vld [vmem:[%s241 + $0x110] sm:$0xff]
        %v337 = vld [vmem:[%s241 + $0x118] sm:$0xff]
        %v338 = vld [vmem:[%s241 + $0x120] sm:$0xff]
        %v339 = vld [vmem:[%s241 + $0x128] sm:$0xff]
        %v340 = vld [vmem:[%s241 + $0x130] sm:$0xff]
        %v341 = vld [vmem:[%s241 + $0x138] sm:$0xff]
        %v342 = vld [vmem:[%s241 + $0x140] sm:$0xff]
        %v343 = vld [vmem:[%s241 + $0x148] sm:$0xff]
        %v344 = vld [vmem:[%s241 + $0x150] sm:$0xff]
        %v345 = vld [vmem:[%s241 + $0x158] sm:$0xff]
        %v346 = vld [vmem:[%s241 + $0x160] sm:$0xff]
        %v347 = vld [vmem:[%s241 + $0x168] sm:$0xff]
        %v348 = vld [vmem:[%s241 + $0x170] sm:$0xff]
        %v349 = vld [vmem:[%s241 + $0x178] sm:$0xff]
        %v350 = vld [vmem:[%s241 + $0x180] sm:$0xff]
        %v351 = vld [vmem:[%s241 + $0x188] sm:$0xff]
        %v352 = vld [vmem:[%s241 + $0x190] sm:$0xff]
        %v353 = vld [vmem:[%s241 + $0x198] sm:$0xff]
        %v354 = vld [vmem:[%s250] sm:$0xff]
        %v355 = vld [vmem:[%s250 + $0x8] sm:$0xff]
        %v356 = vld [vmem:[%s250 + $0x10] sm:$0xff]
        %v357 = vld [vmem:[%s250 + $0x18] sm:$0xff]
        %v358 = vld [vmem:[%s250 + $0x20] sm:$0xff]
        %v359 = vld [vmem:[%s250 + $0x28] sm:$0xff]
        %v360 = vld [vmem:[%s250 + $0x30] sm:$0xff]
        %v361 = vld [vmem:[%s250 + $0x38] sm:$0xff]
        %v362 = vld [vmem:[%s250 + $0x40] sm:$0xff]
        %v363 = vld [vmem:[%s250 + $0x48] sm:$0xff]
        %v364 = vld [vmem:[%s250 + $0x50] sm:$0xff]
        %v365 = vld [vmem:[%s250 + $0x58] sm:$0xff]
        %v366 = vld [vmem:[%s250 + $0x60] sm:$0xff]
        %v367 = vld [vmem:[%s250 + $0x68] sm:$0xff]
        %v368 = vld [vmem:[%s250 + $0x70] sm:$0xff]
        %v369 = vld [vmem:[%s250 + $0x78] sm:$0xff]
        %v370 = vld [vmem:[%s250 + $0x80] sm:$0xff]
        %v371 = vld [vmem:[%s250 + $0x88] sm:$0xff]
        %v372 = vld [vmem:[%s250 + $0x90] sm:$0xff]
        %v373 = vld [vmem:[%s250 + $0x98] sm:$0xff]
        %v374 = vld [vmem:[%s250 + $0xa0] sm:$0xff]
        %v375 = vld [vmem:[%s250 + $0xa8] sm:$0xff]
        %v376 = vld [vmem:[%s250 + $0xb0] sm:$0xff]
        %v377 = vld [vmem:[%s250 + $0xb8] sm:$0xff]
        %v378 = vld [vmem:[%s250 + $0xc0] sm:$0xff]
        %v379 = vld [vmem:[%s250 + $0xc8] sm:$0xff]
        %v380 = vld [vmem:[%s250 + $0xd0] sm:$0xff]
        %v381 = vld [vmem:[%s250 + $0xd8] sm:$0xff]
        %v382 = vld [vmem:[%s250 + $0xe0] sm:$0xff]
        %v383 = vld [vmem:[%s250 + $0xe8] sm:$0xff]
        %v384 = vld [vmem:[%s250 + $0xf0] sm:$0xff]
        %v385 = vld [vmem:[%s250 + $0xf8] sm:$0xff]
        %v386 = vld [vmem:[%s250 + $0x100] sm:$0xff]
        %v387 = vld [vmem:[%s250 + $0x108] sm:$0xff]
        %v388 = vld [vmem:[%s250 + $0x110] sm:$0xff]
        %v389 = vld [vmem:[%s250 + $0x118] sm:$0xff]
        %v390 = vld [vmem:[%s250 + $0x120] sm:$0xff]
        %v391 = vld [vmem:[%s250 + $0x128] sm:$0xff]
        %v392 = vld [vmem:[%s250 + $0x130] sm:$0xff]
        %v393 = vld [vmem:[%s250 + $0x138] sm:$0xff]
        %v394 = vld [vmem:[%s250 + $0x140] sm:$0xff]
        %v395 = vld [vmem:[%s250 + $0x148] sm:$0xff]
        %v396 = vld [vmem:[%s250 + $0x150] sm:$0xff]
        %v397 = vld [vmem:[%s250 + $0x158] sm:$0xff]
        %v398 = vld [vmem:[%s250 + $0x160] sm:$0xff]
        %v399 = vld [vmem:[%s250 + $0x168] sm:$0xff]
        %v400 = vld [vmem:[%s250 + $0x170] sm:$0xff]
        %v401 = vld [vmem:[%s250 + $0x178] sm:$0xff]
        %v402 = vld [vmem:[%s250 + $0x180] sm:$0xff]
        %v403 = vld [vmem:[%s250 + $0x188] sm:$0xff]
        %v404 = vld [vmem:[%s250 + $0x190] sm:$0xff]
        %v405 = vld [vmem:[%s250 + $0x198] sm:$0xff]
        %v406 = vadd.f32 %v302, %v354
        %v407 = vadd.f32 %v303, %v355
        %v408 = vadd.f32 %v304, %v356
        %v409 = vadd.f32 %v305, %v357
        %v410 = vadd.f32 %v306, %v358
        %v411 = vadd.f32 %v307, %v359
        %v412 = vadd.f32 %v308, %v360
        %v413 = vadd.f32 %v309, %v361
        %v414 = vadd.f32 %v310, %v362
        %v415 = vadd.f32 %v311, %v363
        %v416 = vadd.f32 %v312, %v364
        %v417 = vadd.f32 %v313, %v365
        %v418 = vadd.f32 %v314, %v366
        %v419 = vadd.f32 %v315, %v367
        %v420 = vadd.f32 %v316, %v368
        %v421 = vadd.f32 %v317, %v369
        %v422 = vadd.f32 %v318, %v370
        %v423 = vadd.f32 %v319, %v371
        %v424 = vadd.f32 %v320, %v372
        %v425 = vadd.f32 %v321, %v373
        %v426 = vadd.f32 %v322, %v374
        %v427 = vadd.f32 %v323, %v375
        %v428 = vadd.f32 %v324, %v376
        %v429 = vadd.f32 %v325, %v377
        %v430 = vadd.f32 %v326, %v378
        %v431 = vadd.f32 %v327, %v379
        %v432 = vadd.f32 %v328, %v380
        %v433 = vadd.f32 %v329, %v381
        %v434 = vadd.f32 %v330, %v382
        %v435 = vadd.f32 %v331, %v383
        %v436 = vadd.f32 %v332, %v384
        %v437 = vadd.f32 %v333, %v385
        %v438 = vadd.f32 %v334, %v386
        %v439 = vadd.f32 %v335, %v387
        %v440 = vadd.f32 %v336, %v388
        %v441 = vadd.f32 %v337, %v389
        %v442 = vadd.f32 %v338, %v390
        %v443 = vadd.f32 %v339, %v391
        %v444 = vadd.f32 %v340, %v392
        %v445 = vadd.f32 %v341, %v393
        %v446 = vadd.f32 %v342, %v394
        %v447 = vadd.f32 %v343, %v395
        %v448 = vadd.f32 %v344, %v396
        %v449 = vadd.f32 %v345, %v397
        %v450 = vadd.f32 %v346, %v398
        %v451 = vadd.f32 %v347, %v399
        %v452 = vadd.f32 %v348, %v400
        %v453 = vadd.f32 %v349, %v401
        %v454 = vadd.f32 %v350, %v402
        %v455 = vadd.f32 %v351, %v403
        %v456 = vadd.f32 %v352, %v404
        %v457 = vadd.f32 %v353, %v405
        %v458 = vadd.f32 %v406, %v407
        %v459 = vadd.f32 %v458, %v408
        %v460 = vadd.f32 %v459, %v409
        %461 = vadd.xlane.f32.xlu0 %v460
        %v462 = vpop.xlane.xlu0 %461
        %v463 = vadd.f32 %v410, %v411
        %v464 = vadd.f32 %v463, %v412
        %v465 = vadd.f32 %v464, %v413
        %466 = vadd.xlane.f32.xlu0 %v465
        %v467 = vpop.xlane.xlu0 %466
        %v468 = vadd.f32 %v414, %v415
        %v469 = vadd.f32 %v468, %v416
        %v470 = vadd.f32 %v469, %v417
        %471 = vadd.xlane.f32.xlu0 %v470
        %v472 = vpop.xlane.xlu0 %471
        %v473 = vadd.f32 %v418, %v419
        %v474 = vadd.f32 %v473, %v420
        %v475 = vadd.f32 %v474, %v421
        %476 = vadd.xlane.f32.xlu0 %v475
        %v477 = vpop.xlane.xlu0 %476
        %v478 = vadd.f32 %v422, %v423
        %v479 = vadd.f32 %v478, %v424
        %v480 = vadd.f32 %v479, %v425
        %481 = vadd.xlane.f32.xlu0 %v480
        %v482 = vpop.xlane.xlu0 %481
        %v483 = vadd.f32 %v426, %v427
        %v484 = vadd.f32 %v483, %v428
        %v485 = vadd.f32 %v484, %v429
        %486 = vadd.xlane.f32.xlu0 %v485
        %v487 = vpop.xlane.xlu0 %486
        %v488 = vadd.f32 %v430, %v431
        %v489 = vadd.f32 %v488, %v432
        %v490 = vadd.f32 %v489, %v433
        %491 = vadd.xlane.f32.xlu0 %v490
        %v492 = vpop.xlane.xlu0 %491
        %v493 = vadd.f32 %v434, %v435
        %v494 = vadd.f32 %v493, %v436
        %v495 = vadd.f32 %v494, %v437
        %496 = vadd.xlane.f32.xlu0 %v495
        %v497 = vpop.xlane.xlu0 %496
        %v498 = vadd.f32 %v438, %v439
        %v499 = vadd.f32 %v498, %v440
        %v500 = vadd.f32 %v499, %v441
        %501 = vadd.xlane.f32.xlu0 %v500
        %v502 = vpop.xlane.xlu0 %501
        %v503 = vadd.f32 %v442, %v443
        %v504 = vadd.f32 %v503, %v444
        %v505 = vadd.f32 %v504, %v445
        %506 = vadd.xlane.f32.xlu0 %v505
        %v507 = vpop.xlane.xlu0 %506
        %v508 = vadd.f32 %v446, %v447
        %v509 = vadd.f32 %v508, %v448
        %v510 = vadd.f32 %v509, %v449
        %511 = vadd.xlane.f32.xlu0 %v510
        %v512 = vpop.xlane.xlu0 %511
        %v513 = vadd.f32 %v450, %v451
        %v514 = vadd.f32 %v513, %v452
        %v515 = vadd.f32 %v514, %v453
        %516 = vadd.xlane.f32.xlu0 %v515
        %v517 = vpop.xlane.xlu0 %516
        %v518 = vadd.f32 %v454, %v455
        %v519 = vadd.f32 %v518, %v456
        %v520 = vadd.f32 %v519, %v457
        %521 = vadd.xlane.f32.xlu0 %v520
        %v522 = vpop.xlane.xlu0 %521
        %v523 = vmul.f32 %v462, 0.001953125
        %v524 = vmul.f32 %v467, 0.001953125
        %v525 = vmul.f32 %v472, 0.001953125
        %v526 = vmul.f32 %v477, 0.001953125
        %v527 = vmul.f32 %v482, 0.001953125
        %v528 = vmul.f32 %v487, 0.001953125
        %v529 = vmul.f32 %v492, 0.001953125
        %v530 = vmul.f32 %v497, 0.001953125
        %v531 = vmul.f32 %v502, 0.001953125
        %v532 = vmul.f32 %v507, 0.001953125
        %v533 = vmul.f32 %v512, 0.001953125
        %v534 = vmul.f32 %v517, 0.001953125
        %v535 = vmul.f32 %v522, 0.001953125
        %v536 = vsub.f32 %v406, %v523
        %v537 = vsub.f32 %v407, %v523
        %v538 = vsub.f32 %v408, %v523
        %v539 = vsub.f32 %v409, %v523
        %v540 = vsub.f32 %v410, %v524
        %v541 = vsub.f32 %v411, %v524
        %v542 = vsub.f32 %v412, %v524
        %v543 = vsub.f32 %v413, %v524
        %v544 = vsub.f32 %v414, %v525
        %v545 = vsub.f32 %v415, %v525
        %v546 = vsub.f32 %v416, %v525
        %v547 = vsub.f32 %v417, %v525
        %v548 = vsub.f32 %v418, %v526
        %v549 = vsub.f32 %v419, %v526
        %v550 = vsub.f32 %v420, %v526
        %v551 = vsub.f32 %v421, %v526
        %v552 = vsub.f32 %v422, %v527
        %v553 = vsub.f32 %v423, %v527
        %v554 = vsub.f32 %v424, %v527
        %v555 = vsub.f32 %v425, %v527
        %v556 = vsub.f32 %v426, %v528
        %v557 = vsub.f32 %v427, %v528
        %v558 = vsub.f32 %v428, %v528
        %v559 = vsub.f32 %v429, %v528
        %v560 = vsub.f32 %v430, %v529
        %v561 = vsub.f32 %v431, %v529
        %v562 = vsub.f32 %v432, %v529
        %v563 = vsub.f32 %v433, %v529
        %v564 = vsub.f32 %v434, %v530
        %v565 = vsub.f32 %v435, %v530
        %v566 = vsub.f32 %v436, %v530
        %v567 = vsub.f32 %v437, %v530
        %v568 = vsub.f32 %v438, %v531
        %v569 = vsub.f32 %v439, %v531
        %v570 = vsub.f32 %v440, %v531
        %v571 = vsub.f32 %v441, %v531
        %v572 = vsub.f32 %v442, %v532
        %v573 = vsub.f32 %v443, %v532
        %v574 = vsub.f32 %v444, %v532
        %v575 = vsub.f32 %v445, %v532
        %v576 = vsub.f32 %v446, %v533
        %v577 = vsub.f32 %v447, %v533
        %v578 = vsub.f32 %v448, %v533
        %v579 = vsub.f32 %v449, %v533
        %v580 = vsub.f32 %v450, %v534
        %v581 = vsub.f32 %v451, %v534
        %v582 = vsub.f32 %v452, %v534
        %v583 = vsub.f32 %v453, %v534
        %v584 = vsub.f32 %v454, %v535
        %v585 = vsub.f32 %v455, %v535
        %v586 = vsub.f32 %v456, %v535
        %v587 = vsub.f32 %v457, %v535
        %v588 = vmul.f32 %v536, %v536
        %v589 = vmul.f32 %v537, %v537
        %v590 = vmul.f32 %v538, %v538
        %v591 = vmul.f32 %v539, %v539
        %v592 = vmul.f32 %v540, %v540
        %v593 = vmul.f32 %v541, %v541
        %v594 = vmul.f32 %v542, %v542
        %v595 = vmul.f32 %v543, %v543
        %v596 = vmul.f32 %v544, %v544
        %v597 = vmul.f32 %v545, %v545
        %v598 = vmul.f32 %v546, %v546
        %v599 = vmul.f32 %v547, %v547
        %v600 = vmul.f32 %v548, %v548
        %v601 = vmul.f32 %v549, %v549
        %v602 = vmul.f32 %v550, %v550
        %v603 = vmul.f32 %v551, %v551
        %v604 = vmul.f32 %v552, %v552
        %v605 = vmul.f32 %v553, %v553
        %v606 = vmul.f32 %v554, %v554
        %v607 = vmul.f32 %v555, %v555
        %v608 = vmul.f32 %v556, %v556
        %v609 = vmul.f32 %v557, %v557
        %v610 = vmul.f32 %v558, %v558
        %v611 = vmul.f32 %v559, %v559
        %v612 = vmul.f32 %v560, %v560
        %v613 = vmul.f32 %v561, %v561
        %v614 = vmul.f32 %v562, %v562
        %v615 = vmul.f32 %v563, %v563
        %v616 = vmul.f32 %v564, %v564
        %v617 = vmul.f32 %v565, %v565
        %v618 = vmul.f32 %v566, %v566
        %v619 = vmul.f32 %v567, %v567
        %v620 = vmul.f32 %v568, %v568
        %v621 = vmul.f32 %v569, %v569
        %v622 = vmul.f32 %v570, %v570
        %v623 = vmul.f32 %v571, %v571
        %v624 = vmul.f32 %v572, %v572
        %v625 = vmul.f32 %v573, %v573
        %v626 = vmul.f32 %v574, %v574
        %v627 = vmul.f32 %v575, %v575
        %v628 = vmul.f32 %v576, %v576
        %v629 = vmul.f32 %v577, %v577
        %v630 = vmul.f32 %v578, %v578
        %v631 = vmul.f32 %v579, %v579
        %v632 = vmul.f32 %v580, %v580
        %v633 = vmul.f32 %v581, %v581
        %v634 = vmul.f32 %v582, %v582
        %v635 = vmul.f32 %v583, %v583
        %v636 = vmul.f32 %v584, %v584
        %v637 = vmul.f32 %v585, %v585
        %v638 = vmul.f32 %v586, %v586
        %v639 = vmul.f32 %v587, %v587
        %v640 = vadd.f32 %v588, %v589
        %v641 = vadd.f32 %v640, %v590
        %v642 = vadd.f32 %v641, %v591
        %643 = vadd.xlane.f32.xlu0 %v642
        %v644 = vpop.xlane.xlu0 %643
        %v645 = vadd.f32 %v592, %v593
        %v646 = vadd.f32 %v645, %v594
        %v647 = vadd.f32 %v646, %v595
        %648 = vadd.xlane.f32.xlu0 %v647
        %v649 = vpop.xlane.xlu0 %648
        %v650 = vadd.f32 %v596, %v597
        %v651 = vadd.f32 %v650, %v598
        %v652 = vadd.f32 %v651, %v599
        %653 = vadd.xlane.f32.xlu0 %v652
        %v654 = vpop.xlane.xlu0 %653
        %v655 = vadd.f32 %v600, %v601
        %v656 = vadd.f32 %v655, %v602
        %v657 = vadd.f32 %v656, %v603
        %658 = vadd.xlane.f32.xlu0 %v657
        %v659 = vpop.xlane.xlu0 %658
        %v660 = vadd.f32 %v604, %v605
        %v661 = vadd.f32 %v660, %v606
        %v662 = vadd.f32 %v661, %v607
        %663 = vadd.xlane.f32.xlu0 %v662
        %v664 = vpop.xlane.xlu0 %663
        %v665 = vadd.f32 %v608, %v609
        %v666 = vadd.f32 %v665, %v610
        %v667 = vadd.f32 %v666, %v611
        %668 = vadd.xlane.f32.xlu0 %v667
        %v669 = vpop.xlane.xlu0 %668
        %v670 = vadd.f32 %v612, %v613
        %v671 = vadd.f32 %v670, %v614
        %v672 = vadd.f32 %v671, %v615
        %673 = vadd.xlane.f32.xlu0 %v672
        %v674 = vpop.xlane.xlu0 %673
        %v675 = vadd.f32 %v616, %v617
        %v676 = vadd.f32 %v675, %v618
        %v677 = vadd.f32 %v676, %v619
        %678 = vadd.xlane.f32.xlu0 %v677
        %v679 = vpop.xlane.xlu0 %678
        %v680 = vadd.f32 %v620, %v621
        %v681 = vadd.f32 %v680, %v622
        %v682 = vadd.f32 %v681, %v623
        %683 = vadd.xlane.f32.xlu0 %v682
        %v684 = vpop.xlane.xlu0 %683
        %v685 = vadd.f32 %v624, %v625
        %v686 = vadd.f32 %v685, %v626
        %v687 = vadd.f32 %v686, %v627
        %688 = vadd.xlane.f32.xlu0 %v687
        %v689 = vpop.xlane.xlu0 %688
        %v690 = vadd.f32 %v628, %v629
        %v691 = vadd.f32 %v690, %v630
        %v692 = vadd.f32 %v691, %v631
        %693 = vadd.xlane.f32.xlu0 %v692
        %v694 = vpop.xlane.xlu0 %693
        %v695 = vadd.f32 %v632, %v633
        %v696 = vadd.f32 %v695, %v634
        %v697 = vadd.f32 %v696, %v635
        %698 = vadd.xlane.f32.xlu0 %v697
        %v699 = vpop.xlane.xlu0 %698
        %v700 = vadd.f32 %v636, %v637
        %v701 = vadd.f32 %v700, %v638
        %v702 = vadd.f32 %v701, %v639
        %703 = vadd.xlane.f32.xlu0 %v702
        %v704 = vpop.xlane.xlu0 %703
        %v705 = vmul.f32 %v644, 0.001953125
        %v706 = vmul.f32 %v649, 0.001953125
        %v707 = vmul.f32 %v654, 0.001953125
        %v708 = vmul.f32 %v659, 0.001953125
        %v709 = vmul.f32 %v664, 0.001953125
        %v710 = vmul.f32 %v669, 0.001953125
        %v711 = vmul.f32 %v674, 0.001953125
        %v712 = vmul.f32 %v679, 0.001953125
        %v713 = vmul.f32 %v684, 0.001953125
        %v714 = vmul.f32 %v689, 0.001953125
        %v715 = vmul.f32 %v694, 0.001953125
        %v716 = vmul.f32 %v699, 0.001953125
        %v717 = vmul.f32 %v704, 0.001953125
        %v718 = vadd.f32 %v705, 1e-05
        %v719 = vadd.f32 %v706, 1e-05
        %v720 = vadd.f32 %v707, 1e-05
        %v721 = vadd.f32 %v708, 1e-05
        %v722 = vadd.f32 %v709, 1e-05
        %v723 = vadd.f32 %v710, 1e-05
        %v724 = vadd.f32 %v711, 1e-05
        %v725 = vadd.f32 %v712, 1e-05
        %v726 = vadd.f32 %v713, 1e-05
        %v727 = vadd.f32 %v714, 1e-05
        %v728 = vadd.f32 %v715, 1e-05
        %v729 = vadd.f32 %v716, 1e-05
        %v730 = vadd.f32 %v717, 1e-05
        %v731 = vrsqrt.pop %v718
        %v732 = vrsqrt.pop %v719
        %v733 = vrsqrt.pop %v720
        %v734 = vrsqrt.pop %v721
        %v735 = vrsqrt.pop %v722
        %v736 = vrsqrt.pop %v723
        %v737 = vrsqrt.pop %v724
        %v738 = vrsqrt.pop %v725
        %v739 = vrsqrt.pop %v726
        %v740 = vrsqrt.pop %v727
        %v741 = vrsqrt.pop %v728
        %v742 = vrsqrt.pop %v729
        %v743 = vrsqrt.pop %v730
        %v744 = vmul.f32 %v536, %v731
        %v745 = vmul.f32 %v537, %v731
        %v746 = vmul.f32 %v538, %v731
        %v747 = vmul.f32 %v539, %v731
        %v748 = vmul.f32 %v540, %v732
        %v749 = vmul.f32 %v541, %v732
        %v750 = vmul.f32 %v542, %v732
        %v751 = vmul.f32 %v543, %v732
        %v752 = vmul.f32 %v544, %v733
        %v753 = vmul.f32 %v545, %v733
        %v754 = vmul.f32 %v546, %v733
        %v755 = vmul.f32 %v547, %v733
        %v756 = vmul.f32 %v548, %v734
        %v757 = vmul.f32 %v549, %v734
        %v758 = vmul.f32 %v550, %v734
        %v759 = vmul.f32 %v551, %v734
        %v760 = vmul.f32 %v552, %v735
        %v761 = vmul.f32 %v553, %v735
        %v762 = vmul.f32 %v554, %v735
        %v763 = vmul.f32 %v555, %v735
        %v764 = vmul.f32 %v556, %v736
        %v765 = vmul.f32 %v557, %v736
        %v766 = vmul.f32 %v558, %v736
        %v767 = vmul.f32 %v559, %v736
        %v768 = vmul.f32 %v560, %v737
        %v769 = vmul.f32 %v561, %v737
        %v770 = vmul.f32 %v562, %v737
        %v771 = vmul.f32 %v563, %v737
        %v772 = vmul.f32 %v564, %v738
        %v773 = vmul.f32 %v565, %v738
        %v774 = vmul.f32 %v566, %v738
        %v775 = vmul.f32 %v567, %v738
        %v776 = vmul.f32 %v568, %v739
        %v777 = vmul.f32 %v569, %v739
        %v778 = vmul.f32 %v570, %v739
        %v779 = vmul.f32 %v571, %v739
        %v780 = vmul.f32 %v572, %v740
        %v781 = vmul.f32 %v573, %v740
        %v782 = vmul.f32 %v574, %v740
        %v783 = vmul.f32 %v575, %v740
        %v784 = vmul.f32 %v576, %v741
        %v785 = vmul.f32 %v577, %v741
        %v786 = vmul.f32 %v578, %v741
        %v787 = vmul.f32 %v579, %v741
        %v788 = vmul.f32 %v580, %v742
        %v789 = vmul.f32 %v581, %v742
        %v790 = vmul.f32 %v582, %v742
        %v791 = vmul.f32 %v583, %v742
        %v792 = vmul.f32 %v584, %v743
        %v793 = vmul.f32 %v585, %v743
        %v794 = vmul.f32 %v586, %v743
        %v795 = vmul.f32 %v587, %v743
        %v796 = vld [vmem:[#allocation7] sm:$0xf]
        %v798 = vlaneseq
        %v799 = vshrl.u32 %v798, 7
        %v800 = vsub.s32 0, %v799
        %v801 = vrot.slane %v796, %v800
        %v802 = vlaneseq
        %v803 = vshrl.u32 %v802, 7
        %v804 = vsub.s32 1, %v803
        %v805 = vrot.slane %v796, %v804
        %v806 = vlaneseq
        %v807 = vshrl.u32 %v806, 7
        %v808 = vsub.s32 2, %v807
        %v809 = vrot.slane %v796, %v808
        %v810 = vlaneseq
        %v811 = vshrl.u32 %v810, 7
        %v812 = vsub.s32 3, %v811
        %v813 = vrot.slane %v796, %v812
        %v818 = vmul.f32 %v744, %v801
        %v819 = vmul.f32 %v745, %v805
        %v820 = vmul.f32 %v746, %v809
        %v821 = vmul.f32 %v747, %v813
        %v822 = vmul.f32 %v748, %v801
        %v823 = vmul.f32 %v749, %v805
        %v824 = vmul.f32 %v750, %v809
        %v825 = vmul.f32 %v751, %v813
        %v826 = vmul.f32 %v752, %v801
        %v827 = vmul.f32 %v753, %v805
        %v828 = vmul.f32 %v754, %v809
        %v829 = vmul.f32 %v755, %v813
        %v830 = vmul.f32 %v756, %v801
        %v831 = vmul.f32 %v757, %v805
        %v832 = vmul.f32 %v758, %v809
        %v833 = vmul.f32 %v759, %v813
        %v834 = vmul.f32 %v760, %v801
        %v835 = vmul.f32 %v761, %v805
        %v836 = vmul.f32 %v762, %v809
        %v837 = vmul.f32 %v763, %v813
        %v838 = vmul.f32 %v764, %v801
        %v839 = vmul.f32 %v765, %v805
        %v840 = vmul.f32 %v766, %v809
        %v841 = vmul.f32 %v767, %v813
        %v842 = vmul.f32 %v768, %v801
        %v843 = vmul.f32 %v769, %v805
        %v844 = vmul.f32 %v770, %v809
        %v845 = vmul.f32 %v771, %v813
        %v846 = vmul.f32 %v772, %v801
        %v847 = vmul.f32 %v773, %v805
        %v848 = vmul.f32 %v774, %v809
        %v849 = vmul.f32 %v775, %v813
        %v850 = vmul.f32 %v776, %v801
        %v851 = vmul.f32 %v777, %v805
        %v852 = vmul.f32 %v778, %v809
        %v853 = vmul.f32 %v779, %v813
        %v854 = vmul.f32 %v780, %v801
        %v855 = vmul.f32 %v781, %v805
        %v856 = vmul.f32 %v782, %v809
        %v857 = vmul.f32 %v783, %v813
        %v858 = vmul.f32 %v784, %v801
        %v859 = vmul.f32 %v785, %v805
        %v860 = vmul.f32 %v786, %v809
        %v861 = vmul.f32 %v787, %v813
        %v862 = vmul.f32 %v788, %v801
        %v863 = vmul.f32 %v789, %v805
        %v864 = vmul.f32 %v790, %v809
        %v865 = vmul.f32 %v791, %v813
        %v866 = vmul.f32 %v792, %v801
        %v867 = vmul.f32 %v793, %v805
        %v868 = vmul.f32 %v794, %v809
        %v869 = vmul.f32 %v795, %v813
        %v870 = vld [vmem:[%s3] sm:$0xf]
        %v872 = vlaneseq
        %v873 = vshrl.u32 %v872, 7
        %v874 = vsub.s32 0, %v873
        %v875 = vrot.slane %v870, %v874
        %v876 = vlaneseq
        %v877 = vshrl.u32 %v876, 7
        %v878 = vsub.s32 1, %v877
        %v879 = vrot.slane %v870, %v878
        %v880 = vlaneseq
        %v881 = vshrl.u32 %v880, 7
        %v882 = vsub.s32 2, %v881
        %v883 = vrot.slane %v870, %v882
        %v884 = vlaneseq
        %v885 = vshrl.u32 %v884, 7
        %v886 = vsub.s32 3, %v885
        %v887 = vrot.slane %v870, %v886
        %v892 = vadd.f32 %v818, %v875
        %v893 = vadd.f32 %v819, %v879
        %v894 = vadd.f32 %v820, %v883
        %v895 = vadd.f32 %v821, %v887
        %v896 = vadd.f32 %v822, %v875
        %v897 = vadd.f32 %v823, %v879
        %v898 = vadd.f32 %v824, %v883
        %v899 = vadd.f32 %v825, %v887
        %v900 = vadd.f32 %v826, %v875
        %v901 = vadd.f32 %v827, %v879
        %v902 = vadd.f32 %v828, %v883
        %v903 = vadd.f32 %v829, %v887
        %v904 = vadd.f32 %v830, %v875
        %v905 = vadd.f32 %v831, %v879
        %v906 = vadd.f32 %v832, %v883
        %v907 = vadd.f32 %v833, %v887
        %v908 = vadd.f32 %v834, %v875
        %v909 = vadd.f32 %v835, %v879
        %v910 = vadd.f32 %v836, %v883
        %v911 = vadd.f32 %v837, %v887
        %v912 = vadd.f32 %v838, %v875
        %v913 = vadd.f32 %v839, %v879
        %v914 = vadd.f32 %v840, %v883
        %v915 = vadd.f32 %v841, %v887
        %v916 = vadd.f32 %v842, %v875
        %v917 = vadd.f32 %v843, %v879
        %v918 = vadd.f32 %v844, %v883
        %v919 = vadd.f32 %v845, %v887
        %v920 = vadd.f32 %v846, %v875
        %v921 = vadd.f32 %v847, %v879
        %v922 = vadd.f32 %v848, %v883
        %v923 = vadd.f32 %v849, %v887
        %v924 = vadd.f32 %v850, %v875
        %v925 = vadd.f32 %v851, %v879
        %v926 = vadd.f32 %v852, %v883
        %v927 = vadd.f32 %v853, %v887
        %v928 = vadd.f32 %v854, %v875
        %v929 = vadd.f32 %v855, %v879
        %v930 = vadd.f32 %v856, %v883
        %v931 = vadd.f32 %v857, %v887
        %v932 = vadd.f32 %v858, %v875
        %v933 = vadd.f32 %v859, %v879
        %v934 = vadd.f32 %v860, %v883
        %v935 = vadd.f32 %v861, %v887
        %v936 = vadd.f32 %v862, %v875
        %v937 = vadd.f32 %v863, %v879
        %v938 = vadd.f32 %v864, %v883
        %v939 = vadd.f32 %v865, %v887
        %v940 = vadd.f32 %v866, %v875
        %v941 = vadd.f32 %v867, %v879
        %v942 = vadd.f32 %v868, %v883
        %v943 = vadd.f32 %v869, %v887
        %944 = vst [vmem:[%s283] sm:$0xff] %v892
        %945 = vst [vmem:[%s283 + $0x8] sm:$0xff] %v893
        %946 = vst [vmem:[%s283 + $0x10] sm:$0xff] %v894
        %947 = vst [vmem:[%s283 + $0x18] sm:$0xff] %v895
        %948 = vst [vmem:[%s283 + $0x20] sm:$0xff] %v896
        %949 = vst [vmem:[%s283 + $0x28] sm:$0xff] %v897
        %950 = vst [vmem:[%s283 + $0x30] sm:$0xff] %v898
        %951 = vst [vmem:[%s283 + $0x38] sm:$0xff] %v899
        %952 = vst [vmem:[%s283 + $0x40] sm:$0xff] %v900
        %953 = vst [vmem:[%s283 + $0x48] sm:$0xff] %v901
        %954 = vst [vmem:[%s283 + $0x50] sm:$0xff] %v902
        %955 = vst [vmem:[%s283 + $0x58] sm:$0xff] %v903
        %956 = vst [vmem:[%s283 + $0x60] sm:$0xff] %v904
        %957 = vst [vmem:[%s283 + $0x68] sm:$0xff] %v905
        %958 = vst [vmem:[%s283 + $0x70] sm:$0xff] %v906
        %959 = vst [vmem:[%s283 + $0x78] sm:$0xff] %v907
        %960 = vst [vmem:[%s283 + $0x80] sm:$0xff] %v908
        %961 = vst [vmem:[%s283 + $0x88] sm:$0xff] %v909
        %962 = vst [vmem:[%s283 + $0x90] sm:$0xff] %v910
        %963 = vst [vmem:[%s283 + $0x98] sm:$0xff] %v911
        %964 = vst [vmem:[%s283 + $0xa0] sm:$0xff] %v912
        %965 = vst [vmem:[%s283 + $0xa8] sm:$0xff] %v913
        %966 = vst [vmem:[%s283 + $0xb0] sm:$0xff] %v914
        %967 = vst [vmem:[%s283 + $0xb8] sm:$0xff] %v915
        %968 = vst [vmem:[%s283 + $0xc0] sm:$0xff] %v916
        %969 = vst [vmem:[%s283 + $0xc8] sm:$0xff] %v917
        %970 = vst [vmem:[%s283 + $0xd0] sm:$0xff] %v918
        %971 = vst [vmem:[%s283 + $0xd8] sm:$0xff] %v919
        %972 = vst [vmem:[%s283 + $0xe0] sm:$0xff] %v920
        %973 = vst [vmem:[%s283 + $0xe8] sm:$0xff] %v921
        %974 = vst [vmem:[%s283 + $0xf0] sm:$0xff] %v922
        %975 = vst [vmem:[%s283 + $0xf8] sm:$0xff] %v923
        %976 = vst [vmem:[%s283 + $0x100] sm:$0xff] %v924
        %977 = vst [vmem:[%s283 + $0x108] sm:$0xff] %v925
        %978 = vst [vmem:[%s283 + $0x110] sm:$0xff] %v926
        %979 = vst [vmem:[%s283 + $0x118] sm:$0xff] %v927
        %980 = vst [vmem:[%s283 + $0x120] sm:$0xff] %v928
        %981 = vst [vmem:[%s283 + $0x128] sm:$0xff] %v929
        %982 = vst [vmem:[%s283 + $0x130] sm:$0xff] %v930
        %983 = vst [vmem:[%s283 + $0x138] sm:$0xff] %v931
        %984 = vst [vmem:[%s283 + $0x140] sm:$0xff] %v932
        %985 = vst [vmem:[%s283 + $0x148] sm:$0xff] %v933
        %986 = vst [vmem:[%s283 + $0x150] sm:$0xff] %v934
        %987 = vst [vmem:[%s283 + $0x158] sm:$0xff] %v935
        %988 = vst [vmem:[%s283 + $0x160] sm:$0xff] %v936
        %989 = vst [vmem:[%s283 + $0x168] sm:$0xff] %v937
        %990 = vst [vmem:[%s283 + $0x170] sm:$0xff] %v938
        %991 = vst [vmem:[%s283 + $0x178] sm:$0xff] %v939
        %992 = vst [vmem:[%s283 + $0x180] sm:$0xff] %v940
        %993 = vst [vmem:[%s283 + $0x188] sm:$0xff] %v941
        %994 = vst [vmem:[%s283 + $0x190] sm:$0xff] %v942
        %995 = vst [vmem:[%s283 + $0x198] sm:$0xff] %v943
        %s996 = sand.u32 %s126, 1
        %s997 = scalar_lea.sflag [#allocation4], %s996
        %s998 = sand.u32 %s126, 1
        %s999 = smul.addr %s998, 416
        %s1000 = scalar_lea.vmem [#allocation8], %s999
        // Predicated region
        $region49: #{tpu_custom_call.1} parent=35 // pred_check
          %p1001 = pneg %p136
        $region50: #{tpu_custom_call.1} parent=35 // pred_check_branch
          %1003 = sbr.rel (%p1001) target = $region52
        $region51: #{tpu_custom_call.1} parent=35 // pred_region
          %s1004 = smul.u32 13, %s24
          %s1005 = ssub.s32 25, %s1004
          %p1006 = scmp.lt.s32.totalorder %s1005, 13
          %s1007 = scalar_select %p1006, %s1005, 13
          %s1008 = smul.u32 128, %s1007
          %s1009 = smul.u32 %s1008, 4
          %s1011 = ssub.s32 6656, %s1009
          %1012 = vsyncadd %s997, %s1011
          %p1013 = scmp.ne.s32.totalorder 0, %s1009
          %s1014 = smul.addr %s1004, 4
          %s1015 = smul.addr %s1014, 128
          %s1016 = scalar_lea.hbm %s4, %s1015
          %s1017 = smul.u32 32, %s1007
          %s1018 = sshll.u32 %s1000, 4
          %s1019 = int_to_ptr.vmem [resolvable:$true] %s1018
          %s1020 = sshll.u32 %s1017, 4
          %1024 = dma.vmem_to_hbm [thread:$0]  (%p1013), %s1019, %s1020, %s1016, %s997, 512, 512, 32
        $region52: #{tpu_custom_call.1} parent=35 // pred_fallthru
          _
      $region36: #{tpu_custom_call.1} parent=5 // pred_fallthru
        _
      %p1025 = scmp.le.s32.totalorder 2, %s19
      // Predicated region
      $region53: #{tpu_custom_call.1} parent=5 // pred_check
        %p1026 = pneg %p1025
      $region54: #{tpu_custom_call.1} parent=5 // pred_check_branch
        %1028 = sbr.rel (%p1026) target = $region56
      $region55: #{tpu_custom_call.1} parent=5 // pred_region
        %s1029 = ssub.s32 %s19, 2
        // Predicated region
        $region57: #{tpu_custom_call.1} parent=55 // pred_check
          %p1030 = pneg %p142
        $region58: #{tpu_custom_call.1} parent=55 // pred_check_branch
          %1032 = sbr.rel (%p1030) target = $region60
        $region59: #{tpu_custom_call.1} parent=55 // pred_region
          %s1033 = sand.u32 %s127, 1
          %s1034 = scalar_lea.sflag [#allocation4], %s1033
          %s1035 = sand.u32 %s127, 1
          %s1036 = smul.addr %s1035, 416
          %s1037 = scalar_lea.vmem [#allocation8], %s1036
          %1038 = dma.done %s1034, 6656
        $region60: #{tpu_custom_call.1} parent=55 // pred_fallthru
          _
      $region56: #{tpu_custom_call.1} parent=5 // pred_fallthru
        _
    $region6: #{tpu_custom_call.1} parent=1 // loop_footer
      %s23 = sadd.s32 1, %s19
    $region7: #{tpu_custom_call.1} parent=1 // loop_footer_branch
      %18 = sbr.rel target = $region3
    $region8: #{tpu_custom_call.1} parent=1 // loop_exit
      _
    %1039 = vsyncpa [#allocation3], 1
    %s1040 = scalar_lea.sflag [#allocation3], 1
    %1041 = vsyncpa %s1040, 1
    %1042 = vsyncpa [#allocation6], 1
    %s1043 = scalar_lea.sflag [#allocation6], 1
    %1044 = vsyncpa %s1043, 1
    %1045 = vsyncpa [#allocation4], 1
    %s1046 = scalar_lea.sflag [#allocation4], 1
    %1047 = vsyncpa %s1046, 1

</llo_original>
